<compile_context>
chip_gen: v7x
topology: tpu7x:2x2x1
jax: 0.10.0
libtpu: 0.0.40
codegen_flags: <defaults>
</compile_context>

<pallas_src>
import jax
import jax.numpy as jnp
from jax import lax
from jax.experimental import pallas as pl
from jax.experimental.pallas import tpu as pltpu

# ----- model configuration (small, consistent with the module) -----
VOCAB_SIZE   = 16
EMBED_DIM    = 32
KERNEL_NUM   = 4
KERNEL_SIZES = (2, 3, 4)
S_MAX        = max(KERNEL_SIZES)
CLASS_NUM    = 2
BATCH        = 2
MAX_LEN      = 8
FEAT_DIM     = KERNEL_NUM * len(KERNEL_SIZES)       # 12
FEAT_PAD     = 128                                  # lane-dense conv / fc contraction
BL           = BATCH * MAX_LEN

NEG          = -1e30          # mask for pool positions where t + size > MAX_LEN
MATMUL_DTYPE = jnp.float32    # bf16 at scale on v6e/v7x (v7x MXU: bf16/fp8 only);
                              # int8-weight path is a v5e/v6e-only option.


def textcnn_kernel(ids_ref, table_ref, wfold_ref, bias_mask_ref, fcw_ref, fcb_ref,
                   out_ref):
    """Fused embedding gather + all convs + bias/mask + maxpool + ReLU + fc.

    ids_ref      : (B*L, 1) int32        -- raw token ids (flat view, no prep)
    table_ref    : (VOCAB, E)            -- embedding table, MATMUL_DTYPE
    wfold_ref    : (S_MAX*E, FEAT_PAD)   -- zero-padded, concatenated conv weights
    bias_mask_ref: (L, FEAT_PAD) f32     -- conv bias, NEG at invalid pool slots
    fcw_ref      : (FEAT_PAD, CLASS)     -- fc weight (transposed, zero-padded rows)
    fcb_ref      : (1, CLASS) f32        -- fc bias
    out_ref      : (B, CLASS) f32        -- logits
    """
    # --- embedding gather as a one-hot MXU matmul (vocab fits VMEM here) ---
    ids = ids_ref[...]                                               # (BL, 1) int32
    vcol = lax.broadcasted_iota(jnp.int32, (BL, VOCAB_SIZE), 1)
    oh = (ids == vcol).astype(MATMUL_DTYPE)                          # (BL, V), single cast
    emb = jnp.dot(oh, table_ref[...],
                  preferred_element_type=jnp.float32)                # (BL, E), exact
    emb = emb.astype(MATMUL_DTYPE)                                   # no-op at f32

    # --- all three convs against ONE folded (S_MAX*E, FEAT_PAD) weight matrix.
    # Per-tap time shift via a (BL, BL) 0/1 selection matmul (rows past the end
    # are all-zero; cross-batch spill only lands on positions that bias_mask
    # marks invalid, so it never affects the pooled max).
    row = lax.broadcasted_iota(jnp.int32, (BL, BL), 0)
    col = lax.broadcasted_iota(jnp.int32, (BL, BL), 1)

    conv = jnp.dot(emb, wfold_ref[0:EMBED_DIM, :],
                   preferred_element_type=jnp.float32)               # tap j = 0
    for j in range(1, S_MAX):                                        # static unroll
        sel = (col == row + j).astype(MATMUL_DTYPE)                  # shift-by-j selector
        shifted = jnp.dot(sel, emb,
                          preferred_element_type=jnp.float32).astype(MATMUL_DTYPE)
        conv = conv + jnp.dot(
            shifted, wfold_ref[j * EMBED_DIM:(j + 1) * EMBED_DIM, :],
            preferred_element_type=jnp.float32)                      # (BL, FEAT_PAD) f32

    # Bias + pool-validity mask in one broadcast add (mask / accumulate in f32).
    conv = conv.reshape(BATCH, MAX_LEN, FEAT_PAD) + bias_mask_ref[...][None]

    # max_pool1d over time; ReLU commutes with max so apply it after pooling.
    pooled = jnp.maximum(jnp.max(conv, axis=1), 0.0)                 # (B, FEAT_PAD)

    # Dropout == identity at inference.  Final fc.
    logits = jnp.dot(pooled.astype(MATMUL_DTYPE), fcw_ref[...],
                     preferred_element_type=jnp.float32) + fcb_ref[...]
    out_ref[...] = logits


def init_params(key):
    keys = jax.random.split(key, 3 + 2 * len(KERNEL_SIZES))
    params = {}
    params["embedding"] = jax.random.normal(
        keys[0], (VOCAB_SIZE, EMBED_DIM), jnp.float32)
    for i, s in enumerate(KERNEL_SIZES):
        # PyTorch Conv2d weight is (K, 1, s, E); stored here as (s, E, K).
        params[f"conv{s}_w"] = 0.1 * jax.random.normal(
            keys[1 + 2 * i], (s, EMBED_DIM, KERNEL_NUM), jnp.float32)
        params[f"conv{s}_b"] = 0.1 * jax.random.normal(
            keys[2 + 2 * i], (1, KERNEL_NUM), jnp.float32)
    # PyTorch Linear weight is (CLASS_NUM, FEAT_DIM); stored transposed.
    params["fc_w"] = 0.1 * jax.random.normal(
        keys[-2], (FEAT_DIM, CLASS_NUM), jnp.float32)
    params["fc_b"] = 0.1 * jax.random.normal(
        keys[-1], (1, CLASS_NUM), jnp.float32)
    return params


def pack_params(params):
    """One-time weight preprocessing ("model load"), not on the per-call path."""
    # PyTorch would raise if a kernel size exceeded the sequence length.
    assert S_MAX <= MAX_LEN, "kernel size exceeds MAX_LEN"

    # Folded conv weights (VOCAB-independent):
    #   wfold[j*E + e, g*K + k] = conv_w_{s_g}[j, e, k]   (0 for j >= s_g)
    row_blocks = []
    for j in range(S_MAX):
        cols = []
        for s in KERNEL_SIZES:
            cols.append(params[f"conv{s}_w"][j] if j < s
                        else jnp.zeros((EMBED_DIM, KERNEL_NUM), jnp.float32))
        row_blocks.append(jnp.concatenate(cols, axis=1))              # (E, FEAT)
    wfold = jnp.concatenate(row_blocks, axis=0)                       # (S_MAX*E, FEAT)
    wfold = jnp.pad(wfold, ((0, 0), (0, FEAT_PAD - FEAT_DIM)))        # lane-dense N

    # Conv bias with NEG at pool positions where t + size > MAX_LEN; padded cols 0.
    bias = jnp.concatenate(
        [params[f"conv{s}_b"].reshape(1, KERNEL_NUM) for s in KERNEL_SIZES], axis=1)
    pos   = jnp.arange(MAX_LEN, dtype=jnp.int32)[:, None]             # (L, 1)
    sizes = jnp.repeat(jnp.asarray(KERNEL_SIZES, jnp.int32), KERNEL_NUM)[None, :]
    bias_mask = jnp.where((pos + sizes) <= MAX_LEN, bias, NEG)        # (L, FEAT)
    bias_mask = jnp.pad(bias_mask, ((0, 0), (0, FEAT_PAD - FEAT_DIM)))

    fc_w = jnp.pad(params["fc_w"], ((0, FEAT_PAD - FEAT_DIM), (0, 0)))  # (FEAT_PAD, C)

    # Pre-cast matmul operands once here, not per call inside the kernel.
    return {"table":     params["embedding"].astype(MATMUL_DTYPE),
            "wfold":     wfold.astype(MATMUL_DTYPE),
            "bias_mask": bias_mask.astype(jnp.float32),
            "fc_w":      fc_w.astype(MATMUL_DTYPE),
            "fc_b":      params["fc_b"].astype(jnp.float32)}


@jax.jit
def model_forward(his_ids, packed):
    # Per-call prep is ONE metadata-only contiguous reshape of the raw ids
    # (64 bytes, bitcast under jit).  All per-tap shift / one-hot work is
    # inside the kernel.
    ids = his_ids.astype(jnp.int32).reshape(BL, 1)
    vmem = pl.BlockSpec(memory_space=pltpu.MemorySpace.VMEM)
    # Gridless: total resident data is <100 KB, so a single VMEM-resident
    # invocation avoids all per-step pipeline overhead.  (See TODO at top for
    # the gridded / two-TensorCore v7x variant at realistic sizes.)
    return pl.pallas_call(
        textcnn_kernel,
        out_shape=jax.ShapeDtypeStruct((BATCH, CLASS_NUM), jnp.float32),
        in_specs=[vmem] * 6,
        out_specs=vmem,
    )(ids, packed["table"], packed["wfold"], packed["bias_mask"],
      packed["fc_w"], packed["fc_b"])


def reference_forward(his_ids, params):
    """Pure-JAX reference mirroring the PyTorch module semantics."""
    emb = params["embedding"][his_ids].astype(jnp.float32)            # (B, L, E)
    pooled = []
    for s in KERNEL_SIZES:
        w = params[f"conv{s}_w"]                                      # (s, E, K)
        b = params[f"conv{s}_b"]                                      # (1, K)
        lout = MAX_LEN - s + 1
        acc = jnp.zeros((BATCH, lout, KERNEL_NUM), jnp.float32)
        for j in range(s):
            acc = acc + jnp.einsum("ble,ek->blk", emb[:, j:j + lout, :], w[j])
        acc = jnp.maximum(acc + b, 0.0)                                # ReLU
        pooled.append(jnp.max(acc, axis=1))                            # max over time
    feat = jnp.concatenate(pooled, axis=1)                             # (B, FEAT)
    return feat @ params["fc_w"] + params["fc_b"]                      # dropout = identity


if __name__ == "__main__":
    key = jax.random.PRNGKey(0)
    k_param, k_data = jax.random.split(key)
    params = init_params(k_param)
    packed = pack_params(params)                                       # one-time weight prep
    his = jax.random.randint(k_data, (BATCH, MAX_LEN), 0, VOCAB_SIZE, dtype=jnp.int32)

    out = jax.block_until_ready(model_forward(his, packed))

    ref = reference_forward(his, params)
    assert out.shape == (BATCH, CLASS_NUM), out.shape
    assert jnp.allclose(out, ref, atol=1e-4, rtol=1e-4), (out, ref)
    print("KERNEL_OK")
</pallas_src>

<mosaic_0001>
module attributes {stable_mosaic.version = 11 : i64} {
  func.func @textcnn_kernel(%arg0: memref<16x1xi32, #tpu.memory_space<vmem>>, %arg1: memref<16x32xf32, #tpu.memory_space<vmem>>, %arg2: memref<128x128xf32, #tpu.memory_space<vmem>>, %arg3: memref<8x128xf32, #tpu.memory_space<vmem>>, %arg4: memref<128x2xf32, #tpu.memory_space<vmem>>, %arg5: memref<1x2xf32, #tpu.memory_space<vmem>>, %arg6: memref<2x2xf32, #tpu.memory_space<vmem>>) attributes {dimension_semantics = [], scalar_prefetch = 0 : i64, scratch_operands = 0 : i64, tpu.core_type = #tpu.core_type<tc>} {
    %c0 = arith.constant 0 : index
    %c0_0 = arith.constant 0 : index
    %0 = vector.load %arg0[%c0, %c0_0] : memref<16x1xi32, #tpu.memory_space<vmem>>, vector<16x1xi32>
    %1 = tpu.iota {dimensions = array<i32: 1>} : vector<16x16xi32>
    %2 = vector.broadcast %0 : vector<16x1xi32> to vector<16x16xi32>
    %3 = arith.cmpi eq, %2, %1 : vector<16x16xi32>
    %4 = arith.extui %3 : vector<16x16xi1> to vector<16x16xi32>
    %5 = arith.sitofp %4 : vector<16x16xi32> to vector<16x16xf32>
    %c0_1 = arith.constant 0 : index
    %c0_2 = arith.constant 0 : index
    %6 = vector.load %arg1[%c0_1, %c0_2] : memref<16x32xf32, #tpu.memory_space<vmem>>, vector<16x32xf32>
    %cst = arith.constant dense<0.000000e+00> : vector<16x32xf32>
    %7 = tpu.matmul %5, %6, %cst {dimension_numbers = #tpu.dot_dimension_numbers<[1], [0], [0], [1], [0, 0, 1, 1], [], []>} : vector<16x16xf32>, vector<16x32xf32>, vector<16x32xf32> -> vector<16x32xf32>
    %8 = tpu.iota {dimensions = array<i32: 0>} : vector<16x16xi32>
    %9 = tpu.iota {dimensions = array<i32: 1>} : vector<16x16xi32>
    %c0_3 = arith.constant 0 : index
    %c0_4 = arith.constant 0 : index
    %10 = vector.load %arg2[%c0_3, %c0_4] : memref<128x128xf32, #tpu.memory_space<vmem>>, vector<32x128xf32>
    %cst_5 = arith.constant dense<0.000000e+00> : vector<16x128xf32>
    %11 = tpu.matmul %7, %10, %cst_5 {dimension_numbers = #tpu.dot_dimension_numbers<[1], [0], [0], [1], [0, 0, 1, 1], [], []>} : vector<16x32xf32>, vector<32x128xf32>, vector<16x128xf32> -> vector<16x128xf32>
    %c1_i32 = arith.constant 1 : i32
    %12 = vector.broadcast %c1_i32 : i32 to vector<16x16xi32>
    %13 = arith.addi %8, %12 : vector<16x16xi32>
    %14 = arith.cmpi eq, %9, %13 : vector<16x16xi32>
    %15 = arith.extui %14 : vector<16x16xi1> to vector<16x16xi32>
    %16 = arith.sitofp %15 : vector<16x16xi32> to vector<16x16xf32>
    %cst_6 = arith.constant dense<0.000000e+00> : vector<16x32xf32>
    %17 = tpu.matmul %16, %7, %cst_6 {dimension_numbers = #tpu.dot_dimension_numbers<[1], [0], [0], [1], [0, 0, 1, 1], [], []>} : vector<16x16xf32>, vector<16x32xf32>, vector<16x32xf32> -> vector<16x32xf32>
    %c32 = arith.constant 32 : index
    %c0_7 = arith.constant 0 : index
    %18 = vector.load %arg2[%c32, %c0_7] : memref<128x128xf32, #tpu.memory_space<vmem>>, vector<32x128xf32>
    %cst_8 = arith.constant dense<0.000000e+00> : vector<16x128xf32>
    %19 = tpu.matmul %17, %18, %cst_8 {dimension_numbers = #tpu.dot_dimension_numbers<[1], [0], [0], [1], [0, 0, 1, 1], [], []>} : vector<16x32xf32>, vector<32x128xf32>, vector<16x128xf32> -> vector<16x128xf32>
    %20 = arith.addf %11, %19 : vector<16x128xf32>
    %c2_i32 = arith.constant 2 : i32
    %21 = vector.broadcast %c2_i32 : i32 to vector<16x16xi32>
    %22 = arith.addi %8, %21 : vector<16x16xi32>
    %23 = arith.cmpi eq, %9, %22 : vector<16x16xi32>
    %24 = arith.extui %23 : vector<16x16xi1> to vector<16x16xi32>
    %25 = arith.sitofp %24 : vector<16x16xi32> to vector<16x16xf32>
    %cst_9 = arith.constant dense<0.000000e+00> : vector<16x32xf32>
    %26 = tpu.matmul %25, %7, %cst_9 {dimension_numbers = #tpu.dot_dimension_numbers<[1], [0], [0], [1], [0, 0, 1, 1], [], []>} : vector<16x16xf32>, vector<16x32xf32>, vector<16x32xf32> -> vector<16x32xf32>
    %c64 = arith.constant 64 : index
    %c0_10 = arith.constant 0 : index
    %27 = vector.load %arg2[%c64, %c0_10] : memref<128x128xf32, #tpu.memory_space<vmem>>, vector<32x128xf32>
    %cst_11 = arith.constant dense<0.000000e+00> : vector<16x128xf32>
    %28 = tpu.matmul %26, %27, %cst_11 {dimension_numbers = #tpu.dot_dimension_numbers<[1], [0], [0], [1], [0, 0, 1, 1], [], []>} : vector<16x32xf32>, vector<32x128xf32>, vector<16x128xf32> -> vector<16x128xf32>
    %29 = arith.addf %20, %28 : vector<16x128xf32>
    %c3_i32 = arith.constant 3 : i32
    %30 = vector.broadcast %c3_i32 : i32 to vector<16x16xi32>
    %31 = arith.addi %8, %30 : vector<16x16xi32>
    %32 = arith.cmpi eq, %9, %31 : vector<16x16xi32>
    %33 = arith.extui %32 : vector<16x16xi1> to vector<16x16xi32>
    %34 = arith.sitofp %33 : vector<16x16xi32> to vector<16x16xf32>
    %cst_12 = arith.constant dense<0.000000e+00> : vector<16x32xf32>
    %35 = tpu.matmul %34, %7, %cst_12 {dimension_numbers = #tpu.dot_dimension_numbers<[1], [0], [0], [1], [0, 0, 1, 1], [], []>} : vector<16x16xf32>, vector<16x32xf32>, vector<16x32xf32> -> vector<16x32xf32>
    %c96 = arith.constant 96 : index
    %c0_13 = arith.constant 0 : index
    %36 = vector.load %arg2[%c96, %c0_13] : memref<128x128xf32, #tpu.memory_space<vmem>>, vector<32x128xf32>
    %cst_14 = arith.constant dense<0.000000e+00> : vector<16x128xf32>
    %37 = tpu.matmul %35, %36, %cst_14 {dimension_numbers = #tpu.dot_dimension_numbers<[1], [0], [0], [1], [0, 0, 1, 1], [], []>} : vector<16x32xf32>, vector<32x128xf32>, vector<16x128xf32> -> vector<16x128xf32>
    %38 = arith.addf %29, %37 : vector<16x128xf32>
    %39 = vector.shape_cast %38 : vector<16x128xf32> to vector<2x8x128xf32>
    %c0_15 = arith.constant 0 : index
    %c0_16 = arith.constant 0 : index
    %40 = vector.load %arg3[%c0_15, %c0_16] : memref<8x128xf32, #tpu.memory_space<vmem>>, vector<8x128xf32>
    %41 = vector.shape_cast %40 : vector<8x128xf32> to vector<1x8x128xf32>
    %42 = vector.broadcast %41 : vector<1x8x128xf32> to vector<2x8x128xf32>
    %43 = arith.addf %39, %42 : vector<2x8x128xf32>
    %cst_17 = arith.constant dense<0xFF800000> : vector<2x128xf32>
    %44 = vector.multi_reduction <maximumf>, %43, %cst_17 [1] : vector<2x8x128xf32> to vector<2x128xf32>
    %cst_18 = arith.constant 0.000000e+00 : f32
    %45 = vector.broadcast %cst_18 : f32 to vector<2x128xf32>
    %46 = arith.maximumf %44, %45 : vector<2x128xf32>
    %c0_19 = arith.constant 0 : index
    %c0_20 = arith.constant 0 : index
    %47 = vector.load %arg4[%c0_19, %c0_20] : memref<128x2xf32, #tpu.memory_space<vmem>>, vector<128x2xf32>
    %cst_21 = arith.constant dense<0.000000e+00> : vector<2x2xf32>
    %48 = tpu.matmul %46, %47, %cst_21 {dimension_numbers = #tpu.dot_dimension_numbers<[1], [0], [0], [1], [0, 0, 1, 1], [], []>} : vector<2x128xf32>, vector<128x2xf32>, vector<2x2xf32> -> vector<2x2xf32>
    %c0_22 = arith.constant 0 : index
    %c0_23 = arith.constant 0 : index
    %49 = vector.load %arg5[%c0_22, %c0_23] : memref<1x2xf32, #tpu.memory_space<vmem>>, vector<1x2xf32>
    %50 = vector.broadcast %49 : vector<1x2xf32> to vector<2x2xf32>
    %51 = arith.addf %48, %50 : vector<2x2xf32>
    %c0_24 = arith.constant 0 : index
    %c0_25 = arith.constant 0 : index
    %52 = vector.load %arg6[%c0_24, %c0_25] : memref<2x2xf32, #tpu.memory_space<vmem>>, vector<2x2xf32>
    tpu.vector_store %arg6[%c0_24, %c0_25], %51 {strides = array<i32>} : memref<2x2xf32, #tpu.memory_space<vmem>>, vector<2x2xf32>,
    return
  }
}

</mosaic_0001>

<llo_original>
// kernel: model_forward.1
$region0: #{model_forward.1}
  #allocation0 [shape = 'u32[]', space=smem, size = 0x4, offset = 0x4, fixed_abs, tag = 'smem constant byte address 0x4 - core index']
  #allocation1 [shape = 'u32[144,128]{1,0:T(1,128)}', space=vmem, size = 0x12000, scoped, tag = 'internal scratch']
  %s0 = inlined_call_operand.vmem [shape: s32[16,1], index: 0, kind: input, shape index: {}]
  %s1 = inlined_call_operand.vmem [shape: f32[16,32], index: 1, kind: input, shape index: {}]
  %s2 = inlined_call_operand.vmem [shape: f32[128,128], index: 2, kind: input, shape index: {}]
  %s3 = inlined_call_operand.vmem [shape: f32[8,128], index: 3, kind: input, shape index: {}]
  %s4 = inlined_call_operand.vmem [shape: f32[128,2], index: 4, kind: input, shape index: {}]
  %s5 = inlined_call_operand.vmem [shape: f32[1,2], index: 5, kind: input, shape index: {}]
  %s6 = inlined_call_operand.hbm [shape: f32[2,2], index: 6, kind: output, shape index: {}]
  %s7 = sld [smem:[#allocation0]]
  $region34: #{model_forward.1} parent=0
    _
  %s9 = ssub.s32 1, %s7
  %s10 = scalar_select 0, %s9, %s7
  $region1: #{model_forward.1} parent=0
    #allocation2 [shape = 'u8[1024]{0}', space=vmem, size = 0x400, scoped, tag = 'output window, operand 0, single buffered']
    #allocation3 [shape = 's32[1]{0}', space=sflag, size = 0x4, scoped, tag = 'scoped memory for model_forward.1']
    %11 = vsyncpa [#allocation3], 0
    // Predicated region
    $region2: #{model_forward.1} parent=1 // pred_check
      _
    $region3: #{model_forward.1} parent=1 // pred_check_branch
      %13 = sbr.rel (0) target = $region5
    $region4: #{model_forward.1} parent=1 // pred_region
      _
    $region5: #{model_forward.1} parent=1 // pred_fallthru
      _
    // Predicated region
    $region6: #{model_forward.1} parent=1 // pred_check
      _
    $region7: #{model_forward.1} parent=1 // pred_check_branch
      %15 = sbr.rel (0) target = $region9
    $region8: #{model_forward.1} parent=1 // pred_region
      _
    $region9: #{model_forward.1} parent=1 // pred_fallthru
      _
    // Predicated region
    $region10: #{model_forward.1} parent=1 // pred_check
      _
    $region11: #{model_forward.1} parent=1 // pred_check_branch
      %17 = sbr.rel (0) target = $region13
    $region12: #{model_forward.1} parent=1 // pred_region
      _
    $region13: #{model_forward.1} parent=1 // pred_fallthru
      _
    // Predicated region
    $region14: #{model_forward.1} parent=1 // pred_check
      _
    $region15: #{model_forward.1} parent=1 // pred_check_branch
      %19 = sbr.rel (0) target = $region17
    $region16: #{model_forward.1} parent=1 // pred_region
      _
    $region17: #{model_forward.1} parent=1 // pred_fallthru
      _
    // Predicated region
    $region18: #{model_forward.1} parent=1 // pred_check
      _
    $region19: #{model_forward.1} parent=1 // pred_check_branch
      %21 = sbr.rel (0) target = $region21
    $region20: #{model_forward.1} parent=1 // pred_region
      _
    $region21: #{model_forward.1} parent=1 // pred_fallthru
      _
    // Predicated region
    $region22: #{model_forward.1} parent=1 // pred_check
      _
    $region23: #{model_forward.1} parent=1 // pred_check_branch
      %23 = sbr.rel (0) target = $region25
    $region24: #{model_forward.1} parent=1 // pred_region
      _
    $region25: #{model_forward.1} parent=1 // pred_fallthru
      _
    %v24 = vld [vmem:[%s0] sm:$0xff]
    %v25 = vld [vmem:[%s0 + $0x8] sm:$0xff]
    %v26 = vlaneseq
    %v27 = vand.u32 %v26, 127
    %28 = vset.pattern.permute.xlu0 0
    %29 = vperm.xlu0 %28, %v24
    %v30 = vpop.permute.xlu0 %29
    %31 = vset.pattern.permute.xlu0 0
    %32 = vperm.xlu0 %31, %v25
    %v33 = vpop.permute.xlu0 %32
    %vm34 = vcmp.eq.s32.totalorder %v30, %v27
    %vm35 = vcmp.eq.s32.totalorder %v33, %v27
    %v36 = vsel %vm34, 1, 0
    %v37 = vsel %vm35, 1, 0
    %v38 = vcvt.s32.f32 %v36
    %v39 = vcvt.s32.f32 %v37
    %v40 = vld [vmem:[%s1] sm:$0xff]
    %v41 = vld [vmem:[%s1 + $0x8] sm:$0xff]
    %vm42 = vcmask 130048
    %v44 = vsel %vm42, %v38, 0
    %v47 = vsel %vm42, %v39, 0
    %49 = vmatprep.subr.mxu0 0.0
    %50 = vmatpush1.msra.mxu0 %v40
    %51 = vmatprep.subr.mxu0 0.0
    %52 = vmatpush1.msra.mxu0 %v41
    %53 = vmatprep.subr.mxu0 0.0
    %54 = vmatpush1.msra.mxu0 0.0
    %55 = vmatprep.subr.mxu0 0.0
    %56 = vmatpush1.msra.mxu0 0.0
    %57 = vmatprep.subr.mxu0 0.0
    %58 = vmatpush1.msra.mxu0 0.0
    %59 = vmatprep.subr.mxu0 0.0
    %60 = vmatpush1.msra.mxu0 0.0
    %61 = vmatprep.subr.mxu0 0.0
    %62 = vmatpush1.msra.mxu0 0.0
    %63 = vmatprep.subr.mxu0 0.0
    %64 = vmatpush1.msra.mxu0 0.0
    %65 = vmatprep.subr.mxu0 0.0
    %66 = vmatpush1.msra.mxu0 0.0
    %67 = vmatprep.subr.mxu0 0.0
    %68 = vmatpush1.msra.mxu0 0.0
    %69 = vmatprep.subr.mxu0 0.0
    %70 = vmatpush1.msra.mxu0 0.0
    %71 = vmatprep.subr.mxu0 0.0
    %72 = vmatpush1.msra.mxu0 0.0
    %73 = vmatprep.subr.mxu0 0.0
    %74 = vmatpush1.msra.mxu0 0.0
    %75 = vmatprep.subr.mxu0 0.0
    %76 = vmatpush1.msra.mxu0 0.0
    %77 = vmatprep.subr.mxu0 0.0
    %78 = vmatpush1.msra.mxu0 0.0
    %79 = vmatprep.subr.mxu0 0.0
    %80 = vmatpush1.msra.mxu0 0.0
    %81 = vmatprep.subr.mxu0 0.0
    %82 = vmatpush1.msra.mxu0 0.0
    %83 = vmatprep.subr.mxu0 0.0
    %84 = vmatpush1.msra.mxu0 0.0
    %85 = vmatprep.subr.mxu0 0.0
    %86 = vmatpush1.msra.mxu0 0.0
    %87 = vmatprep.subr.mxu0 0.0
    %88 = vmatpush1.msra.mxu0 0.0
    %89 = vmatprep.subr.mxu0 0.0
    %90 = vmatpush1.msra.mxu0 0.0
    %91 = vmatprep.subr.mxu0 0.0
    %92 = vmatpush1.msra.mxu0 0.0
    %93 = vmatprep.subr.mxu0 0.0
    %94 = vmatpush1.msra.mxu0 0.0
    %95 = vmatprep.subr.mxu0 0.0
    %96 = vmatpush1.msra.mxu0 0.0
    %97 = vmatprep.subr.mxu0 0.0
    %98 = vmatpush1.msra.mxu0 0.0
    %99 = vmatprep.subr.mxu0 0.0
    %100 = vmatpush1.msra.mxu0 0.0
    %101 = vmatprep.subr.mxu0 0.0
    %102 = vmatpush1.msra.mxu0 0.0
    %103 = vmatprep.subr.mxu0 0.0
    %104 = vmatpush1.msra.mxu0 0.0
    %105 = vmatprep.subr.mxu0 0.0
    %106 = vmatpush1.msra.mxu0 0.0
    %107 = vmatprep.subr.mxu0 0.0
    %108 = vmatpush1.msra.mxu0 0.0
    %109 = vmatprep.subr.mxu0 0.0
    %110 = vmatpush1.msra.mxu0 0.0
    %111 = vmatprep.subr.mxu0 0.0
    %112 = vmatpush1.msra.mxu0 0.0
    %113 = vmatprep.mubr.f32.mxu0 0.0
    %114 = vmatmul.mubr.f32.gmra.mrb[0].mxu0 %v44
    %v115 = vpop.f32.mrb[0].mxu0
    %v116 = vadd.f32 0.0, %v115
    %v117 = vpop.f32.mrb[0].mxu0
    %118 = vmatprep.mubr.f32.mxu0 0.0
    %119 = vmatmul.mubr.f32.gmra.mrb[0].mxu0 %v47
    %v120 = vpop.f32.mrb[0].mxu0
    %v121 = vadd.f32 0.0, %v120
    %v122 = vpop.f32.mrb[0].mxu0
    %123 = vdwg.mxu0
    %v124 = vlaneseq
    %v125 = vshrl.u32 %v124, 7
    %v126 = vadd.s32 %v125, 8
    %v127 = vld [vmem:[%s2] sm:$0xff]
    %v128 = vld [vmem:[%s2 + $0x8] sm:$0xff]
    %v129 = vld [vmem:[%s2 + $0x10] sm:$0xff]
    %v130 = vld [vmem:[%s2 + $0x18] sm:$0xff]
    %v131 = vadd.s32 %v125, 1
    %v132 = vadd.s32 %v126, 1
    %vm133 = vcmp.eq.s32.totalorder %v27, %v131
    %vm134 = vcmp.eq.s32.totalorder %v27, %v132
    %v135 = vsel %vm133, 1, 0
    %v136 = vsel %vm134, 1, 0
    %v137 = vcvt.s32.f32 %v135
    %v138 = vcvt.s32.f32 %v136
    %v140 = vsel %vm42, %v137, 0
    %v143 = vsel %vm42, %v138, 0
    %145 = vmatprep.subr.mxu0 0.0
    %146 = vmatpush1.msra.mxu0 %v116
    %147 = vmatprep.subr.mxu0 0.0
    %148 = vmatpush1.msra.mxu0 %v121
    %149 = vmatprep.subr.mxu0 0.0
    %150 = vmatpush1.msra.mxu0 0.0
    %151 = vmatprep.subr.mxu0 0.0
    %152 = vmatpush1.msra.mxu0 0.0
    %153 = vmatprep.subr.mxu0 0.0
    %154 = vmatpush1.msra.mxu0 0.0
    %155 = vmatprep.subr.mxu0 0.0
    %156 = vmatpush1.msra.mxu0 0.0
    %157 = vmatprep.subr.mxu0 0.0
    %158 = vmatpush1.msra.mxu0 0.0
    %159 = vmatprep.subr.mxu0 0.0
    %160 = vmatpush1.msra.mxu0 0.0
    %161 = vmatprep.subr.mxu0 0.0
    %162 = vmatpush1.msra.mxu0 0.0
    %163 = vmatprep.subr.mxu0 0.0
    %164 = vmatpush1.msra.mxu0 0.0
    %165 = vmatprep.subr.mxu0 0.0
    %166 = vmatpush1.msra.mxu0 0.0
    %167 = vmatprep.subr.mxu0 0.0
    %168 = vmatpush1.msra.mxu0 0.0
    %169 = vmatprep.subr.mxu0 0.0
    %170 = vmatpush1.msra.mxu0 0.0
    %171 = vmatprep.subr.mxu0 0.0
    %172 = vmatpush1.msra.mxu0 0.0
    %173 = vmatprep.subr.mxu0 0.0
    %174 = vmatpush1.msra.mxu0 0.0
    %175 = vmatprep.subr.mxu0 0.0
    %176 = vmatpush1.msra.mxu0 0.0
    %177 = vmatprep.subr.mxu0 0.0
    %178 = vmatpush1.msra.mxu0 0.0
    %179 = vmatprep.subr.mxu0 0.0
    %180 = vmatpush1.msra.mxu0 0.0
    %181 = vmatprep.subr.mxu0 0.0
    %182 = vmatpush1.msra.mxu0 0.0
    %183 = vmatprep.subr.mxu0 0.0
    %184 = vmatpush1.msra.mxu0 0.0
    %185 = vmatprep.subr.mxu0 0.0
    %186 = vmatpush1.msra.mxu0 0.0
    %187 = vmatprep.subr.mxu0 0.0
    %188 = vmatpush1.msra.mxu0 0.0
    %189 = vmatprep.subr.mxu0 0.0
    %190 = vmatpush1.msra.mxu0 0.0
    %191 = vmatprep.subr.mxu0 0.0
    %192 = vmatpush1.msra.mxu0 0.0
    %193 = vmatprep.subr.mxu0 0.0
    %194 = vmatpush1.msra.mxu0 0.0
    %195 = vmatprep.subr.mxu0 0.0
    %196 = vmatpush1.msra.mxu0 0.0
    %197 = vmatprep.subr.mxu0 0.0
    %198 = vmatpush1.msra.mxu0 0.0
    %199 = vmatprep.subr.mxu0 0.0
    %200 = vmatpush1.msra.mxu0 0.0
    %201 = vmatprep.subr.mxu0 0.0
    %202 = vmatpush1.msra.mxu0 0.0
    %203 = vmatprep.subr.mxu0 0.0
    %204 = vmatpush1.msra.mxu0 0.0
    %205 = vmatprep.subr.mxu0 0.0
    %206 = vmatpush1.msra.mxu0 0.0
    %207 = vmatprep.subr.mxu0 0.0
    %208 = vmatpush1.msra.mxu0 0.0
    %209 = vmatprep.mubr.f32.mxu0 0.0
    %210 = vmatmul.mubr.f32.gmra.mrb[0].mxu0 %v140
    %v211 = vpop.f32.mrb[0].mxu0
    %v212 = vadd.f32 0.0, %v211
    %v213 = vpop.f32.mrb[0].mxu0
    %214 = vmatprep.mubr.f32.mxu0 0.0
    %215 = vmatmul.mubr.f32.gmra.mrb[0].mxu0 %v143
    %v216 = vpop.f32.mrb[0].mxu0
    %v217 = vadd.f32 0.0, %v216
    %v218 = vpop.f32.mrb[0].mxu0
    %219 = vdwg.mxu0
    %v220 = vld [vmem:[%s2 + $0x20] sm:$0xff]
    %v221 = vld [vmem:[%s2 + $0x28] sm:$0xff]
    %v222 = vld [vmem:[%s2 + $0x30] sm:$0xff]
    %v223 = vld [vmem:[%s2 + $0x38] sm:$0xff]
    %vm224 = vcmask 261120
    %v226 = vsel %vm224, %v212, 0
    %v229 = vsel %vm224, %v217, 0
    %231 = vmatprep.subr.mxu0 0.0
    %232 = vmatpush1.msra.mxu0 %v220
    %233 = vmatprep.subr.mxu0 0.0
    %234 = vmatpush1.msra.mxu0 %v221
    %235 = vmatprep.subr.mxu0 0.0
    %236 = vmatpush1.msra.mxu0 %v222
    %237 = vmatprep.subr.mxu0 0.0
    %238 = vmatpush1.msra.mxu0 %v223
    %239 = vmatprep.subr.mxu0 0.0
    %240 = vmatpush1.msra.mxu0 0.0
    %241 = vmatprep.subr.mxu0 0.0
    %242 = vmatpush1.msra.mxu0 0.0
    %243 = vmatprep.subr.mxu0 0.0
    %244 = vmatpush1.msra.mxu0 0.0
    %245 = vmatprep.subr.mxu0 0.0
    %246 = vmatpush1.msra.mxu0 0.0
    %247 = vmatprep.subr.mxu0 0.0
    %248 = vmatpush1.msra.mxu0 0.0
    %249 = vmatprep.subr.mxu0 0.0
    %250 = vmatpush1.msra.mxu0 0.0
    %251 = vmatprep.subr.mxu0 0.0
    %252 = vmatpush1.msra.mxu0 0.0
    %253 = vmatprep.subr.mxu0 0.0
    %254 = vmatpush1.msra.mxu0 0.0
    %255 = vmatprep.subr.mxu0 0.0
    %256 = vmatpush1.msra.mxu0 0.0
    %257 = vmatprep.subr.mxu0 0.0
    %258 = vmatpush1.msra.mxu0 0.0
    %259 = vmatprep.subr.mxu0 0.0
    %260 = vmatpush1.msra.mxu0 0.0
    %261 = vmatprep.subr.mxu0 0.0
    %262 = vmatpush1.msra.mxu0 0.0
    %263 = vmatprep.subr.mxu0 0.0
    %264 = vmatpush1.msra.mxu0 0.0
    %265 = vmatprep.subr.mxu0 0.0
    %266 = vmatpush1.msra.mxu0 0.0
    %267 = vmatprep.subr.mxu0 0.0
    %268 = vmatpush1.msra.mxu0 0.0
    %269 = vmatprep.subr.mxu0 0.0
    %270 = vmatpush1.msra.mxu0 0.0
    %271 = vmatprep.subr.mxu0 0.0
    %272 = vmatpush1.msra.mxu0 0.0
    %273 = vmatprep.subr.mxu0 0.0
    %274 = vmatpush1.msra.mxu0 0.0
    %275 = vmatprep.subr.mxu0 0.0
    %276 = vmatpush1.msra.mxu0 0.0
    %277 = vmatprep.subr.mxu0 0.0
    %278 = vmatpush1.msra.mxu0 0.0
    %279 = vmatprep.subr.mxu0 0.0
    %280 = vmatpush1.msra.mxu0 0.0
    %281 = vmatprep.subr.mxu0 0.0
    %282 = vmatpush1.msra.mxu0 0.0
    %283 = vmatprep.subr.mxu0 0.0
    %284 = vmatpush1.msra.mxu0 0.0
    %285 = vmatprep.subr.mxu0 0.0
    %286 = vmatpush1.msra.mxu0 0.0
    %287 = vmatprep.subr.mxu0 0.0
    %288 = vmatpush1.msra.mxu0 0.0
    %289 = vmatprep.subr.mxu0 0.0
    %290 = vmatpush1.msra.mxu0 0.0
    %291 = vmatprep.subr.mxu0 0.0
    %292 = vmatpush1.msra.mxu0 0.0
    %293 = vmatprep.subr.mxu0 0.0
    %294 = vmatpush1.msra.mxu0 0.0
    %295 = vmatprep.mubr.f32.mxu0 0.0
    %296 = vmatmul.mubr.f32.gmra.mrb[0].mxu0 %v226
    %v297 = vpop.f32.mrb[0].mxu0
    %v298 = vadd.f32 0.0, %v297
    %v299 = vpop.f32.mrb[0].mxu0
    %300 = vmatprep.mubr.f32.mxu0 0.0
    %301 = vmatmul.mubr.f32.gmra.mrb[0].mxu0 %v229
    %v302 = vpop.f32.mrb[0].mxu0
    %v303 = vadd.f32 0.0, %v302
    %v304 = vpop.f32.mrb[0].mxu0
    %305 = vdwg.mxu0
    %v307 = vsel %vm224, %v116, 0
    %v310 = vsel %vm224, %v121, 0
    %312 = vmatprep.subr.mxu0 0.0
    %313 = vmatpush1.msra.mxu0 %v127
    %314 = vmatprep.subr.mxu0 0.0
    %315 = vmatpush1.msra.mxu0 %v128
    %316 = vmatprep.subr.mxu0 0.0
    %317 = vmatpush1.msra.mxu0 %v129
    %318 = vmatprep.subr.mxu0 0.0
    %319 = vmatpush1.msra.mxu0 %v130
    %320 = vmatprep.subr.mxu0 0.0
    %321 = vmatpush1.msra.mxu0 0.0
    %322 = vmatprep.subr.mxu0 0.0
    %323 = vmatpush1.msra.mxu0 0.0
    %324 = vmatprep.subr.mxu0 0.0
    %325 = vmatpush1.msra.mxu0 0.0
    %326 = vmatprep.subr.mxu0 0.0
    %327 = vmatpush1.msra.mxu0 0.0
    %328 = vmatprep.subr.mxu0 0.0
    %329 = vmatpush1.msra.mxu0 0.0
    %330 = vmatprep.subr.mxu0 0.0
    %331 = vmatpush1.msra.mxu0 0.0
    %332 = vmatprep.subr.mxu0 0.0
    %333 = vmatpush1.msra.mxu0 0.0
    %334 = vmatprep.subr.mxu0 0.0
    %335 = vmatpush1.msra.mxu0 0.0
    %336 = vmatprep.subr.mxu0 0.0
    %337 = vmatpush1.msra.mxu0 0.0
    %338 = vmatprep.subr.mxu0 0.0
    %339 = vmatpush1.msra.mxu0 0.0
    %340 = vmatprep.subr.mxu0 0.0
    %341 = vmatpush1.msra.mxu0 0.0
    %342 = vmatprep.subr.mxu0 0.0
    %343 = vmatpush1.msra.mxu0 0.0
    %344 = vmatprep.subr.mxu0 0.0
    %345 = vmatpush1.msra.mxu0 0.0
    %346 = vmatprep.subr.mxu0 0.0
    %347 = vmatpush1.msra.mxu0 0.0
    %348 = vmatprep.subr.mxu0 0.0
    %349 = vmatpush1.msra.mxu0 0.0
    %350 = vmatprep.subr.mxu0 0.0
    %351 = vmatpush1.msra.mxu0 0.0
    %352 = vmatprep.subr.mxu0 0.0
    %353 = vmatpush1.msra.mxu0 0.0
    %354 = vmatprep.subr.mxu0 0.0
    %355 = vmatpush1.msra.mxu0 0.0
    %356 = vmatprep.subr.mxu0 0.0
    %357 = vmatpush1.msra.mxu0 0.0
    %358 = vmatprep.subr.mxu0 0.0
    %359 = vmatpush1.msra.mxu0 0.0
    %360 = vmatprep.subr.mxu0 0.0
    %361 = vmatpush1.msra.mxu0 0.0
    %362 = vmatprep.subr.mxu0 0.0
    %363 = vmatpush1.msra.mxu0 0.0
    %364 = vmatprep.subr.mxu0 0.0
    %365 = vmatpush1.msra.mxu0 0.0
    %366 = vmatprep.subr.mxu0 0.0
    %367 = vmatpush1.msra.mxu0 0.0
    %368 = vmatprep.subr.mxu0 0.0
    %369 = vmatpush1.msra.mxu0 0.0
    %370 = vmatprep.subr.mxu0 0.0
    %371 = vmatpush1.msra.mxu0 0.0
    %372 = vmatprep.subr.mxu0 0.0
    %373 = vmatpush1.msra.mxu0 0.0
    %374 = vmatprep.subr.mxu0 0.0
    %375 = vmatpush1.msra.mxu0 0.0
    %376 = vmatprep.mubr.f32.mxu0 0.0
    %377 = vmatmul.mubr.f32.gmra.mrb[0].mxu0 %v307
    %v378 = vpop.f32.mrb[0].mxu0
    %v379 = vadd.f32 %v298, %v378
    %v380 = vpop.f32.mrb[0].mxu0
    %381 = vmatprep.mubr.f32.mxu0 0.0
    %382 = vmatmul.mubr.f32.gmra.mrb[0].mxu0 %v310
    %v383 = vpop.f32.mrb[0].mxu0
    %v384 = vadd.f32 %v303, %v383
    %v385 = vpop.f32.mrb[0].mxu0
    %386 = vdwg.mxu0
    %v387 = vadd.s32 %v125, 2
    %v388 = vadd.s32 %v126, 2
    %vm389 = vcmp.eq.s32.totalorder %v27, %v387
    %vm390 = vcmp.eq.s32.totalorder %v27, %v388
    %v391 = vsel %vm389, 1, 0
    %v392 = vsel %vm390, 1, 0
    %v393 = vcvt.s32.f32 %v391
    %v394 = vcvt.s32.f32 %v392
    %v396 = vsel %vm42, %v393, 0
    %v399 = vsel %vm42, %v394, 0
    %401 = vmatprep.subr.mxu0 0.0
    %402 = vmatpush1.msra.mxu0 %v116
    %403 = vmatprep.subr.mxu0 0.0
    %404 = vmatpush1.msra.mxu0 %v121
    %405 = vmatprep.subr.mxu0 0.0
    %406 = vmatpush1.msra.mxu0 0.0
    %407 = vmatprep.subr.mxu0 0.0
    %408 = vmatpush1.msra.mxu0 0.0
    %409 = vmatprep.subr.mxu0 0.0
    %410 = vmatpush1.msra.mxu0 0.0
    %411 = vmatprep.subr.mxu0 0.0
    %412 = vmatpush1.msra.mxu0 0.0
    %413 = vmatprep.subr.mxu0 0.0
    %414 = vmatpush1.msra.mxu0 0.0
    %415 = vmatprep.subr.mxu0 0.0
    %416 = vmatpush1.msra.mxu0 0.0
    %417 = vmatprep.subr.mxu0 0.0
    %418 = vmatpush1.msra.mxu0 0.0
    %419 = vmatprep.subr.mxu0 0.0
    %420 = vmatpush1.msra.mxu0 0.0
    %421 = vmatprep.subr.mxu0 0.0
    %422 = vmatpush1.msra.mxu0 0.0
    %423 = vmatprep.subr.mxu0 0.0
    %424 = vmatpush1.msra.mxu0 0.0
    %425 = vmatprep.subr.mxu0 0.0
    %426 = vmatpush1.msra.mxu0 0.0
    %427 = vmatprep.subr.mxu0 0.0
    %428 = vmatpush1.msra.mxu0 0.0
    %429 = vmatprep.subr.mxu0 0.0
    %430 = vmatpush1.msra.mxu0 0.0
    %431 = vmatprep.subr.mxu0 0.0
    %432 = vmatpush1.msra.mxu0 0.0
    %433 = vmatprep.subr.mxu0 0.0
    %434 = vmatpush1.msra.mxu0 0.0
    %435 = vmatprep.subr.mxu0 0.0
    %436 = vmatpush1.msra.mxu0 0.0
    %437 = vmatprep.subr.mxu0 0.0
    %438 = vmatpush1.msra.mxu0 0.0
    %439 = vmatprep.subr.mxu0 0.0
    %440 = vmatpush1.msra.mxu0 0.0
    %441 = vmatprep.subr.mxu0 0.0
    %442 = vmatpush1.msra.mxu0 0.0
    %443 = vmatprep.subr.mxu0 0.0
    %444 = vmatpush1.msra.mxu0 0.0
    %445 = vmatprep.subr.mxu0 0.0
    %446 = vmatpush1.msra.mxu0 0.0
    %447 = vmatprep.subr.mxu0 0.0
    %448 = vmatpush1.msra.mxu0 0.0
    %449 = vmatprep.subr.mxu0 0.0
    %450 = vmatpush1.msra.mxu0 0.0
    %451 = vmatprep.subr.mxu0 0.0
    %452 = vmatpush1.msra.mxu0 0.0
    %453 = vmatprep.subr.mxu0 0.0
    %454 = vmatpush1.msra.mxu0 0.0
    %455 = vmatprep.subr.mxu0 0.0
    %456 = vmatpush1.msra.mxu0 0.0
    %457 = vmatprep.subr.mxu0 0.0
    %458 = vmatpush1.msra.mxu0 0.0
    %459 = vmatprep.subr.mxu0 0.0
    %460 = vmatpush1.msra.mxu0 0.0
    %461 = vmatprep.subr.mxu0 0.0
    %462 = vmatpush1.msra.mxu0 0.0
    %463 = vmatprep.subr.mxu0 0.0
    %464 = vmatpush1.msra.mxu0 0.0
    %465 = vmatprep.mubr.f32.mxu0 0.0
    %466 = vmatmul.mubr.f32.gmra.mrb[0].mxu0 %v396
    %v467 = vpop.f32.mrb[0].mxu0
    %v468 = vadd.f32 0.0, %v467
    %v469 = vpop.f32.mrb[0].mxu0
    %470 = vmatprep.mubr.f32.mxu0 0.0
    %471 = vmatmul.mubr.f32.gmra.mrb[0].mxu0 %v399
    %v472 = vpop.f32.mrb[0].mxu0
    %v473 = vadd.f32 0.0, %v472
    %v474 = vpop.f32.mrb[0].mxu0
    %475 = vdwg.mxu0
    %v476 = vld [vmem:[%s2 + $0x40] sm:$0xff]
    %v477 = vld [vmem:[%s2 + $0x48] sm:$0xff]
    %v478 = vld [vmem:[%s2 + $0x50] sm:$0xff]
    %v479 = vld [vmem:[%s2 + $0x58] sm:$0xff]
    %v481 = vsel %vm224, %v468, 0
    %v484 = vsel %vm224, %v473, 0
    %486 = vmatprep.subr.mxu0 0.0
    %487 = vmatpush1.msra.mxu0 %v476
    %488 = vmatprep.subr.mxu0 0.0
    %489 = vmatpush1.msra.mxu0 %v477
    %490 = vmatprep.subr.mxu0 0.0
    %491 = vmatpush1.msra.mxu0 %v478
    %492 = vmatprep.subr.mxu0 0.0
    %493 = vmatpush1.msra.mxu0 %v479
    %494 = vmatprep.subr.mxu0 0.0
    %495 = vmatpush1.msra.mxu0 0.0
    %496 = vmatprep.subr.mxu0 0.0
    %497 = vmatpush1.msra.mxu0 0.0
    %498 = vmatprep.subr.mxu0 0.0
    %499 = vmatpush1.msra.mxu0 0.0
    %500 = vmatprep.subr.mxu0 0.0
    %501 = vmatpush1.msra.mxu0 0.0
    %502 = vmatprep.subr.mxu0 0.0
    %503 = vmatpush1.msra.mxu0 0.0
    %504 = vmatprep.subr.mxu0 0.0
    %505 = vmatpush1.msra.mxu0 0.0
    %506 = vmatprep.subr.mxu0 0.0
    %507 = vmatpush1.msra.mxu0 0.0
    %508 = vmatprep.subr.mxu0 0.0
    %509 = vmatpush1.msra.mxu0 0.0
    %510 = vmatprep.subr.mxu0 0.0
    %511 = vmatpush1.msra.mxu0 0.0
    %512 = vmatprep.subr.mxu0 0.0
    %513 = vmatpush1.msra.mxu0 0.0
    %514 = vmatprep.subr.mxu0 0.0
    %515 = vmatpush1.msra.mxu0 0.0
    %516 = vmatprep.subr.mxu0 0.0
    %517 = vmatpush1.msra.mxu0 0.0
    %518 = vmatprep.subr.mxu0 0.0
    %519 = vmatpush1.msra.mxu0 0.0
    %520 = vmatprep.subr.mxu0 0.0
    %521 = vmatpush1.msra.mxu0 0.0
    %522 = vmatprep.subr.mxu0 0.0
    %523 = vmatpush1.msra.mxu0 0.0
    %524 = vmatprep.subr.mxu0 0.0
    %525 = vmatpush1.msra.mxu0 0.0
    %526 = vmatprep.subr.mxu0 0.0
    %527 = vmatpush1.msra.mxu0 0.0
    %528 = vmatprep.subr.mxu0 0.0
    %529 = vmatpush1.msra.mxu0 0.0
    %530 = vmatprep.subr.mxu0 0.0
    %531 = vmatpush1.msra.mxu0 0.0
    %532 = vmatprep.subr.mxu0 0.0
    %533 = vmatpush1.msra.mxu0 0.0
    %534 = vmatprep.subr.mxu0 0.0
    %535 = vmatpush1.msra.mxu0 0.0
    %536 = vmatprep.subr.mxu0 0.0
    %537 = vmatpush1.msra.mxu0 0.0
    %538 = vmatprep.subr.mxu0 0.0
    %539 = vmatpush1.msra.mxu0 0.0
    %540 = vmatprep.subr.mxu0 0.0
    %541 = vmatpush1.msra.mxu0 0.0
    %542 = vmatprep.subr.mxu0 0.0
    %543 = vmatpush1.msra.mxu0 0.0
    %544 = vmatprep.subr.mxu0 0.0
    %545 = vmatpush1.msra.mxu0 0.0
    %546 = vmatprep.subr.mxu0 0.0
    %547 = vmatpush1.msra.mxu0 0.0
    %548 = vmatprep.subr.mxu0 0.0
    %549 = vmatpush1.msra.mxu0 0.0
    %550 = vmatprep.mubr.f32.mxu0 0.0
    %551 = vmatmul.mubr.f32.gmra.mrb[0].mxu0 %v481
    %v552 = vpop.f32.mrb[0].mxu0
    %v553 = vadd.f32 0.0, %v552
    %v554 = vpop.f32.mrb[0].mxu0
    %555 = vmatprep.mubr.f32.mxu0 0.0
    %556 = vmatmul.mubr.f32.gmra.mrb[0].mxu0 %v484
    %v557 = vpop.f32.mrb[0].mxu0
    %v558 = vadd.f32 0.0, %v557
    %v559 = vpop.f32.mrb[0].mxu0
    %560 = vdwg.mxu0
    %v561 = vadd.f32 %v379, %v553
    %v562 = vadd.f32 %v384, %v558
    %v563 = vadd.s32 %v125, 3
    %v564 = vadd.s32 %v126, 3
    %vm565 = vcmp.eq.s32.totalorder %v27, %v563
    %vm566 = vcmp.eq.s32.totalorder %v27, %v564
    %v567 = vsel %vm565, 1, 0
    %v568 = vsel %vm566, 1, 0
    %v569 = vcvt.s32.f32 %v567
    %v570 = vcvt.s32.f32 %v568
    %v572 = vsel %vm42, %v569, 0
    %v575 = vsel %vm42, %v570, 0
    %577 = vmatprep.subr.mxu0 0.0
    %578 = vmatpush1.msra.mxu0 %v116
    %579 = vmatprep.subr.mxu0 0.0
    %580 = vmatpush1.msra.mxu0 %v121
    %581 = vmatprep.subr.mxu0 0.0
    %582 = vmatpush1.msra.mxu0 0.0
    %583 = vmatprep.subr.mxu0 0.0
    %584 = vmatpush1.msra.mxu0 0.0
    %585 = vmatprep.subr.mxu0 0.0
    %586 = vmatpush1.msra.mxu0 0.0
    %587 = vmatprep.subr.mxu0 0.0
    %588 = vmatpush1.msra.mxu0 0.0
    %589 = vmatprep.subr.mxu0 0.0
    %590 = vmatpush1.msra.mxu0 0.0
    %591 = vmatprep.subr.mxu0 0.0
    %592 = vmatpush1.msra.mxu0 0.0
    %593 = vmatprep.subr.mxu0 0.0
    %594 = vmatpush1.msra.mxu0 0.0
    %595 = vmatprep.subr.mxu0 0.0
    %596 = vmatpush1.msra.mxu0 0.0
    %597 = vmatprep.subr.mxu0 0.0
    %598 = vmatpush1.msra.mxu0 0.0
    %599 = vmatprep.subr.mxu0 0.0
    %600 = vmatpush1.msra.mxu0 0.0
    %601 = vmatprep.subr.mxu0 0.0
    %602 = vmatpush1.msra.mxu0 0.0
    %603 = vmatprep.subr.mxu0 0.0
    %604 = vmatpush1.msra.mxu0 0.0
    %605 = vmatprep.subr.mxu0 0.0
    %606 = vmatpush1.msra.mxu0 0.0
    %607 = vmatprep.subr.mxu0 0.0
    %608 = vmatpush1.msra.mxu0 0.0
    %609 = vmatprep.subr.mxu0 0.0
    %610 = vmatpush1.msra.mxu0 0.0
    %611 = vmatprep.subr.mxu0 0.0
    %612 = vmatpush1.msra.mxu0 0.0
    %613 = vmatprep.subr.mxu0 0.0
    %614 = vmatpush1.msra.mxu0 0.0
    %615 = vmatprep.subr.mxu0 0.0
    %616 = vmatpush1.msra.mxu0 0.0
    %617 = vmatprep.subr.mxu0 0.0
    %618 = vmatpush1.msra.mxu0 0.0
    %619 = vmatprep.subr.mxu0 0.0
    %620 = vmatpush1.msra.mxu0 0.0
    %621 = vmatprep.subr.mxu0 0.0
    %622 = vmatpush1.msra.mxu0 0.0
    %623 = vmatprep.subr.mxu0 0.0
    %624 = vmatpush1.msra.mxu0 0.0
    %625 = vmatprep.subr.mxu0 0.0
    %626 = vmatpush1.msra.mxu0 0.0
    %627 = vmatprep.subr.mxu0 0.0
    %628 = vmatpush1.msra.mxu0 0.0
    %629 = vmatprep.subr.mxu0 0.0
    %630 = vmatpush1.msra.mxu0 0.0
    %631 = vmatprep.subr.mxu0 0.0
    %632 = vmatpush1.msra.mxu0 0.0
    %633 = vmatprep.subr.mxu0 0.0
    %634 = vmatpush1.msra.mxu0 0.0
    %635 = vmatprep.subr.mxu0 0.0
    %636 = vmatpush1.msra.mxu0 0.0
    %637 = vmatprep.subr.mxu0 0.0
    %638 = vmatpush1.msra.mxu0 0.0
    %639 = vmatprep.subr.mxu0 0.0
    %640 = vmatpush1.msra.mxu0 0.0
    %641 = vmatprep.mubr.f32.mxu0 0.0
    %642 = vmatmul.mubr.f32.gmra.mrb[0].mxu0 %v572
    %v643 = vpop.f32.mrb[0].mxu0
    %v644 = vadd.f32 0.0, %v643
    %v645 = vpop.f32.mrb[0].mxu0
    %646 = vmatprep.mubr.f32.mxu0 0.0
    %647 = vmatmul.mubr.f32.gmra.mrb[0].mxu0 %v575
    %v648 = vpop.f32.mrb[0].mxu0
    %v649 = vadd.f32 0.0, %v648
    %v650 = vpop.f32.mrb[0].mxu0
    %651 = vdwg.mxu0
    %v652 = vld [vmem:[%s2 + $0x60] sm:$0xff]
    %v653 = vld [vmem:[%s2 + $0x68] sm:$0xff]
    %v654 = vld [vmem:[%s2 + $0x70] sm:$0xff]
    %v655 = vld [vmem:[%s2 + $0x78] sm:$0xff]
    %v657 = vsel %vm224, %v644, 0
    %v660 = vsel %vm224, %v649, 0
    %662 = vmatprep.subr.mxu0 0.0
    %663 = vmatpush1.msra.mxu0 %v652
    %664 = vmatprep.subr.mxu0 0.0
    %665 = vmatpush1.msra.mxu0 %v653
    %666 = vmatprep.subr.mxu0 0.0
    %667 = vmatpush1.msra.mxu0 %v654
    %668 = vmatprep.subr.mxu0 0.0
    %669 = vmatpush1.msra.mxu0 %v655
    %670 = vmatprep.subr.mxu0 0.0
    %671 = vmatpush1.msra.mxu0 0.0
    %672 = vmatprep.subr.mxu0 0.0
    %673 = vmatpush1.msra.mxu0 0.0
    %674 = vmatprep.subr.mxu0 0.0
    %675 = vmatpush1.msra.mxu0 0.0
    %676 = vmatprep.subr.mxu0 0.0
    %677 = vmatpush1.msra.mxu0 0.0
    %678 = vmatprep.subr.mxu0 0.0
    %679 = vmatpush1.msra.mxu0 0.0
    %680 = vmatprep.subr.mxu0 0.0
    %681 = vmatpush1.msra.mxu0 0.0
    %682 = vmatprep.subr.mxu0 0.0
    %683 = vmatpush1.msra.mxu0 0.0
    %684 = vmatprep.subr.mxu0 0.0
    %685 = vmatpush1.msra.mxu0 0.0
    %686 = vmatprep.subr.mxu0 0.0
    %687 = vmatpush1.msra.mxu0 0.0
    %688 = vmatprep.subr.mxu0 0.0
    %689 = vmatpush1.msra.mxu0 0.0
    %690 = vmatprep.subr.mxu0 0.0
    %691 = vmatpush1.msra.mxu0 0.0
    %692 = vmatprep.subr.mxu0 0.0
    %693 = vmatpush1.msra.mxu0 0.0
    %694 = vmatprep.subr.mxu0 0.0
    %695 = vmatpush1.msra.mxu0 0.0
    %696 = vmatprep.subr.mxu0 0.0
    %697 = vmatpush1.msra.mxu0 0.0
    %698 = vmatprep.subr.mxu0 0.0
    %699 = vmatpush1.msra.mxu0 0.0
    %700 = vmatprep.subr.mxu0 0.0
    %701 = vmatpush1.msra.mxu0 0.0
    %702 = vmatprep.subr.mxu0 0.0
    %703 = vmatpush1.msra.mxu0 0.0
    %704 = vmatprep.subr.mxu0 0.0
    %705 = vmatpush1.msra.mxu0 0.0
    %706 = vmatprep.subr.mxu0 0.0
    %707 = vmatpush1.msra.mxu0 0.0
    %708 = vmatprep.subr.mxu0 0.0
    %709 = vmatpush1.msra.mxu0 0.0
    %710 = vmatprep.subr.mxu0 0.0
    %711 = vmatpush1.msra.mxu0 0.0
    %712 = vmatprep.subr.mxu0 0.0
    %713 = vmatpush1.msra.mxu0 0.0
    %714 = vmatprep.subr.mxu0 0.0
    %715 = vmatpush1.msra.mxu0 0.0
    %716 = vmatprep.subr.mxu0 0.0
    %717 = vmatpush1.msra.mxu0 0.0
    %718 = vmatprep.subr.mxu0 0.0
    %719 = vmatpush1.msra.mxu0 0.0
    %720 = vmatprep.subr.mxu0 0.0
    %721 = vmatpush1.msra.mxu0 0.0
    %722 = vmatprep.subr.mxu0 0.0
    %723 = vmatpush1.msra.mxu0 0.0
    %724 = vmatprep.subr.mxu0 0.0
    %725 = vmatpush1.msra.mxu0 0.0
    %726 = vmatprep.mubr.f32.mxu0 0.0
    %727 = vmatmul.mubr.f32.gmra.mrb[0].mxu0 %v657
    %v728 = vpop.f32.mrb[0].mxu0
    %v729 = vadd.f32 0.0, %v728
    %v730 = vpop.f32.mrb[0].mxu0
    %731 = vmatprep.mubr.f32.mxu0 0.0
    %732 = vmatmul.mubr.f32.gmra.mrb[0].mxu0 %v660
    %v733 = vpop.f32.mrb[0].mxu0
    %v734 = vadd.f32 0.0, %v733
    %v735 = vpop.f32.mrb[0].mxu0
    %736 = vdwg.mxu0
    %v737 = vadd.f32 %v561, %v729
    %v738 = vadd.f32 %v562, %v734
    %v739 = vld [vmem:[%s3] sm:$0xff]
    %v740 = vadd.f32 %v737, %v739
    %v741 = vadd.f32 %v738, %v739
    %v742 = vrot.slane %v740, 4
    %v743 = vmax.f32 %v740, %v742
    %v744 = vrot.slane %v743, 2
    %v745 = vmax.f32 %v743, %v744
    %v746 = vrot.slane %v745, 1
    %v747 = vmax.f32 %v745, %v746
    %v748 = vrot.slane %v741, 4
    %v749 = vmax.f32 %v741, %v748
    %v750 = vrot.slane %v749, 2
    %v751 = vmax.f32 %v749, %v750
    %v752 = vrot.slane %v751, 1
    %v753 = vmax.f32 %v751, %v752
    %v754 = vmax.f32 %v747, 0.0
    %v755 = vmax.f32 %v753, 0.0
    %v756 = vld [vmem:[%s4] sm:$0xff]
    %v757 = vld [vmem:[%s4 + $0x8] sm:$0xff]
    %v758 = vld [vmem:[%s4 + $0x10] sm:$0xff]
    %v759 = vld [vmem:[%s4 + $0x18] sm:$0xff]
    %v760 = vld [vmem:[%s4 + $0x20] sm:$0xff]
    %v761 = vld [vmem:[%s4 + $0x28] sm:$0xff]
    %v762 = vld [vmem:[%s4 + $0x30] sm:$0xff]
    %v763 = vld [vmem:[%s4 + $0x38] sm:$0xff]
    %v764 = vld [vmem:[%s4 + $0x40] sm:$0xff]
    %v765 = vld [vmem:[%s4 + $0x48] sm:$0xff]
    %v766 = vld [vmem:[%s4 + $0x50] sm:$0xff]
    %v767 = vld [vmem:[%s4 + $0x58] sm:$0xff]
    %v768 = vld [vmem:[%s4 + $0x60] sm:$0xff]
    %v769 = vld [vmem:[%s4 + $0x68] sm:$0xff]
    %v770 = vld [vmem:[%s4 + $0x70] sm:$0xff]
    %v771 = vld [vmem:[%s4 + $0x78] sm:$0xff]
    %v772 = vld [vmem:[%s5] sm:$0x1]
    %v774 = vlaneseq
    %v775 = vshrl.u32 %v774, 7
    %v776 = vsub.s32 0, %v775
    %v777 = vrot.slane %v772, %v776
    %vm781 = vcmask 1041409
    %v782 = vsel %vm781, %v755, %v754
    %784 = vmatprep.subr.mxu0 0.0
    %785 = vmatpush1.msra.mxu0 %v756
    %786 = vmatprep.subr.mxu0 0.0
    %787 = vmatpush1.msra.mxu0 %v757
    %788 = vmatprep.subr.mxu0 0.0
    %789 = vmatpush1.msra.mxu0 %v758
    %790 = vmatprep.subr.mxu0 0.0
    %791 = vmatpush1.msra.mxu0 %v759
    %792 = vmatprep.subr.mxu0 0.0
    %793 = vmatpush1.msra.mxu0 %v760
    %794 = vmatprep.subr.mxu0 0.0
    %795 = vmatpush1.msra.mxu0 %v761
    %796 = vmatprep.subr.mxu0 0.0
    %797 = vmatpush1.msra.mxu0 %v762
    %798 = vmatprep.subr.mxu0 0.0
    %799 = vmatpush1.msra.mxu0 %v763
    %800 = vmatprep.subr.mxu0 0.0
    %801 = vmatpush1.msra.mxu0 %v764
    %802 = vmatprep.subr.mxu0 0.0
    %803 = vmatpush1.msra.mxu0 %v765
    %804 = vmatprep.subr.mxu0 0.0
    %805 = vmatpush1.msra.mxu0 %v766
    %806 = vmatprep.subr.mxu0 0.0
    %807 = vmatpush1.msra.mxu0 %v767
    %808 = vmatprep.subr.mxu0 0.0
    %809 = vmatpush1.msra.mxu0 %v768
    %810 = vmatprep.subr.mxu0 0.0
    %811 = vmatpush1.msra.mxu0 %v769
    %812 = vmatprep.subr.mxu0 0.0
    %813 = vmatpush1.msra.mxu0 %v770
    %814 = vmatprep.subr.mxu0 0.0
    %815 = vmatpush1.msra.mxu0 %v771
    %816 = vmatprep.subr.mxu0 0.0
    %817 = vmatpush1.msra.mxu0 0.0
    %818 = vmatprep.subr.mxu0 0.0
    %819 = vmatpush1.msra.mxu0 0.0
    %820 = vmatprep.subr.mxu0 0.0
    %821 = vmatpush1.msra.mxu0 0.0
    %822 = vmatprep.subr.mxu0 0.0
    %823 = vmatpush1.msra.mxu0 0.0
    %824 = vmatprep.subr.mxu0 0.0
    %825 = vmatpush1.msra.mxu0 0.0
    %826 = vmatprep.subr.mxu0 0.0
    %827 = vmatpush1.msra.mxu0 0.0
    %828 = vmatprep.subr.mxu0 0.0
    %829 = vmatpush1.msra.mxu0 0.0
    %830 = vmatprep.subr.mxu0 0.0
    %831 = vmatpush1.msra.mxu0 0.0
    %832 = vmatprep.subr.mxu0 0.0
    %833 = vmatpush1.msra.mxu0 0.0
    %834 = vmatprep.subr.mxu0 0.0
    %835 = vmatpush1.msra.mxu0 0.0
    %836 = vmatprep.subr.mxu0 0.0
    %837 = vmatpush1.msra.mxu0 0.0
    %838 = vmatprep.subr.mxu0 0.0
    %839 = vmatpush1.msra.mxu0 0.0
    %840 = vmatprep.subr.mxu0 0.0
    %841 = vmatpush1.msra.mxu0 0.0
    %842 = vmatprep.subr.mxu0 0.0
    %843 = vmatpush1.msra.mxu0 0.0
    %844 = vmatprep.subr.mxu0 0.0
    %845 = vmatpush1.msra.mxu0 0.0
    %846 = vmatprep.subr.mxu0 0.0
    %847 = vmatpush1.msra.mxu0 0.0
    %848 = vmatprep.mubr.f32.mxu0 0.0
    %849 = vmatmul.mubr.f32.gmra.mrb[0].mxu0 %v782
    %v850 = vpop.f32.mrb[0].mxu0
    %v851 = vadd.f32 %v777, %v850
    %v852 = vpop.f32.mrb[0].mxu0
    %853 = vdwg.mxu0
    %vm854 = vcmask 9216
    %855 = vst.msk [vmem:[#allocation2] sm:$0x3] %vm854, %v851
    // Predicated region
    $region26: #{model_forward.1} parent=1 // pred_check
      _
    $region27: #{model_forward.1} parent=1 // pred_check_branch
      %857 = sbr.rel (0) target = $region29
    $region28: #{model_forward.1} parent=1 // pred_region
      %s859 = ssub.s32 32, 32
      %860 = vsyncadd [#allocation3], %s859
      %s862 = sshll.u32 [#allocation2], 4
      %s863 = int_to_ptr.vmem [resolvable:$true] %s862
      %865 = dma.vmem_to_hbm [thread:$0]  %s863, 32, %s6, [#allocation3]
    $region29: #{model_forward.1} parent=1 // pred_fallthru
      _
    // Predicated region
    $region30: #{model_forward.1} parent=1 // pred_check
      _
    $region31: #{model_forward.1} parent=1 // pred_check_branch
      %867 = sbr.rel (0) target = $region33
    $region32: #{model_forward.1} parent=1 // pred_region
      %868 = dma.done [#allocation3], 32
    $region33: #{model_forward.1} parent=1 // pred_fallthru
      _
    %869 = vsyncpa [#allocation3], 1

</llo_original>
